<compile_context>
chip_gen: v7x
topology: tpu7x:2x2x1
jax: 0.10.0
libtpu: 0.0.40
codegen_flags: <defaults>
</compile_context>

<pallas_src>
import jax
import jax.numpy as jnp
from jax.experimental import pallas as pl
from jax.experimental.pallas import tpu as pltpu


def _sft_kernel(x0_ref, x1_ref, w1_ref, b1_ref, w2_ref, b2_ref, o_ref):
    """One (batch, HW-tile) block.

    x0_ref: (C_out, T)           features to modulate
    x1_ref: (C_in, T)            condition map
    w1_ref: (2*C_mid, C_in)      stacked  [scale_conv0 ; shift_conv0]
    b1_ref: (2*C_mid, 1)
    w2_ref: (2*C_out, 2*C_mid)   block-diagonal [scale_conv1, 0 ; 0, shift_conv1]
    b2_ref: (2*C_out, 1)
    o_ref : (C_out, T)
    """
    x1 = x1_ref[...]
    x0 = x0_ref[...].astype(jnp.float32)

    # conv0 (scale & shift branches fused along the output-channel axis) + ReLU
    h = jnp.dot(w1_ref[...], x1, preferred_element_type=jnp.float32) + b1_ref[...]
    h = jnp.maximum(h, 0.0)

    # conv1 as one block-diagonal matmul -> [scale ; shift] stacked on sublanes
    ss = jnp.dot(w2_ref[...], h.astype(w2_ref.dtype),
                 preferred_element_type=jnp.float32) + b2_ref[...]

    c_out = o_ref.shape[0]
    scale = ss[:c_out, :]      # static split on an 8-sublane-aligned boundary
    shift = ss[c_out:, :]
    o_ref[...] = (x0 * (scale + 1.0) + shift).astype(o_ref.dtype)


def _pick_tile_hw(hw, batch, *, target=1024, min_total_steps=8):
    """Lane tile: multiple of 128, at most `target` (mem-bound roofline already
    saturates near 512-1024 lanes), and capped so the grid has enough steps for
    DMA/compute overlap and v7x megacore sharding."""
    if hw <= 128:
        # TODO(synk): for tiny maps (H*W < 128) stores are sub-128-lane; merging
        # B into the lane axis ((C, B*HW) layout) would fix it at the cost of a
        # wrapper transpose -- not worth it for these sizes.
        return hw
    want_j = max(2, -(-min_total_steps // max(batch, 1)))       # ceil-div
    cap = max(128, (hw // want_j) // 128 * 128)                 # round down to 128
    return max(128, min(target, cap))


def sft_layer_forward(x0, x1, params, *, tile_hw=None):
    """out = x0 * (scale(x1) + 1) + shift(x1); tensors NCHW, convs are 1x1."""
    ws0, bs0, ws1, bs1, wh0, bh0, wh1, bh1 = params
    b, c_out, h, w = x0.shape
    b1_, c_in, h1, w1_ = x1.shape
    assert (b1_, h1, w1_) == (b, h, w)
    c_mid = ws0.shape[0]
    hw = h * w

    # Free reshapes: channels-first, H*W on the lane-dense last axis.
    x0_3d = x0.reshape(b, c_out, hw)
    x1_3d = x1.reshape(b, c_in, hw)

    # --- Fused parameters (scale & shift branches in one pair of matmuls) ---
    # Follow the activation dtype for the MXU path; accumulate in f32.
    wdtype = jnp.bfloat16 if x1.dtype == jnp.bfloat16 else jnp.float32
    w1f = jnp.concatenate([ws0, wh0], axis=0).astype(wdtype)          # (2*C_mid, C_in)
    b1f = jnp.concatenate([bs0, bh0], axis=0).reshape(2 * c_mid, 1).astype(jnp.float32)
    w2f = jnp.zeros((2 * c_out, 2 * c_mid), wdtype)
    w2f = w2f.at[:c_out, :c_mid].set(ws1.astype(wdtype))
    w2f = w2f.at[c_out:, c_mid:].set(wh1.astype(wdtype))              # block-diag
    b2f = jnp.concatenate([bs1, bh1], axis=0).reshape(2 * c_out, 1).astype(jnp.float32)

    if tile_hw is None:
        tile_hw = _pick_tile_hw(hw, b)
    tile_hw = min(tile_hw, hw)
    grid = (b, pl.cdiv(hw, tile_hw))      # last HW block may be clipped (safe: per-lane op)

    # Generation-safe VMEM budget: double-buffered x0/x1/out blocks,
    # f32 intermediates (h and [scale;shift]) and the resident weights.
    itemsize = jnp.dtype(x0.dtype).itemsize
    block_bytes = (
        2 * (c_in + 2 * c_out) * tile_hw * itemsize
        + 2 * (2 * c_mid + 2 * c_out) * tile_hw * 4
        + (w1f.size + w2f.size + b1f.size + b2f.size) * 4
    )
    vmem_limit = int(min(max(4 * block_bytes, 16 * 1024 * 1024), 48 * 1024 * 1024))

    def const_spec(shape):
        # Constant block index -> Pallas keeps it VMEM-resident (no re-DMA).
        return pl.BlockSpec(shape, lambda i, j: (0, 0))

    out_3d = pl.pallas_call(
        _sft_kernel,
        out_shape=jax.ShapeDtypeStruct((b, c_out, hw), x0.dtype),
        grid_spec=pltpu.PrefetchScalarGridSpec(
            num_scalar_prefetch=0,
            grid=grid,
            in_specs=[
                pl.BlockSpec((None, c_out, tile_hw), lambda i, j: (i, 0, j)),  # x0
                pl.BlockSpec((None, c_in, tile_hw), lambda i, j: (i, 0, j)),   # x1
                const_spec((2 * c_mid, c_in)),   # fused conv0 weight
                const_spec((2 * c_mid, 1)),      # fused conv0 bias
                const_spec((2 * c_out, 2 * c_mid)),  # block-diag conv1 weight
                const_spec((2 * c_out, 1)),      # fused conv1 bias
            ],
            out_specs=pl.BlockSpec((None, c_out, tile_hw), lambda i, j: (i, 0, j)),
        ),
        compiler_params=pltpu.CompilerParams(
            dimension_semantics=("parallel", "parallel"),
            vmem_limit_bytes=vmem_limit,
        ),
    )(x0_3d, x1_3d, w1f, b1f, w2f, b2f)

    return out_3d.reshape(b, c_out, h, w)


class SFTLayerPallas:
    """Mirrors the PyTorch SFTLayer module (forward pass only)."""

    def __init__(self, in_ch, out_ch, factor=1, *, key=None):
        mid = in_ch // factor
        if key is None:
            key = jax.random.PRNGKey(0)
        ks = jax.random.split(key, 4)

        def conv_init(k, c_dst, c_src):
            # Deterministic Conv2d-style init (uniform with fan_in scaling).
            bound = 1.0 / (c_src ** 0.5)
            kw, kb = jax.random.split(k)
            w_ = jax.random.uniform(kw, (c_dst, c_src), jnp.float32, -bound, bound)
            b_ = jax.random.uniform(kb, (c_dst,), jnp.float32, -bound, bound)
            return w_, b_

        self.ws0, self.bs0 = conv_init(ks[0], mid, in_ch)      # SFT_scale_conv0
        self.ws1, self.bs1 = conv_init(ks[1], out_ch, mid)     # SFT_scale_conv1
        self.wh0, self.bh0 = conv_init(ks[2], mid, in_ch)      # SFT_shift_conv0
        self.wh1, self.bh1 = conv_init(ks[3], out_ch, mid)     # SFT_shift_conv1

    @property
    def params(self):
        return (self.ws0, self.bs0, self.ws1, self.bs1,
                self.wh0, self.bh0, self.wh1, self.bh1)

    def __call__(self, x):
        x0, x1 = x[0], x[1]
        return sft_layer_forward(x0, x1, self.params)


def _ref_sft(x0, x1, params):
    """Pure-JAX reference of the SFTLayer forward."""
    ws0, bs0, ws1, bs1, wh0, bh0, wh1, bh1 = params
    hp = jax.lax.Precision.HIGHEST

    def conv1x1(x, w_, b_):
        y = jnp.einsum('bchw,oc->bohw', x, w_, precision=hp)
        return y + b_[None, :, None, None]

    scale = conv1x1(jax.nn.relu(conv1x1(x1, ws0, bs0)), ws1, bs1)
    shift = conv1x1(jax.nn.relu(conv1x1(x1, wh0, bh0)), wh1, bh1)
    return x0 * (scale + 1.0) + shift


if __name__ == "__main__":
    key = jax.random.PRNGKey(0)
    k_x0, k_x1, k_p = jax.random.split(key, 3)

    # Small shapes consistent with the module: x = (x0, x1), both NCHW.
    B, H, W = 2, 16, 16
    in_ch, out_ch, factor = 32, 32, 2   # mid = 16

    x1 = jax.random.normal(k_x1, (B, in_ch, H, W), jnp.float32)   # condition map
    x0 = jax.random.normal(k_x0, (B, out_ch, H, W), jnp.float32)  # features

    sft = SFTLayerPallas(in_ch, out_ch, factor, key=k_p)

    y = jax.block_until_ready(sft((x0, x1)))
    assert y.shape == x0.shape

    y_ref = _ref_sft(x0, x1, sft.params)
    err = float(jnp.max(jnp.abs(y - y_ref)))
    assert jnp.allclose(y, y_ref, atol=2e-4, rtol=2e-4), err

    print("KERNEL_OK")
</pallas_src>

<mosaic_0001>
module attributes {stable_mosaic.version = 11 : i64} {
  func.func @_sft_kernel(%arg0: i32, %arg1: i32, %arg2: memref<1x32x128xf32, #tpu.memory_space<vmem>>, %arg3: memref<1x32x128xf32, #tpu.memory_space<vmem>>, %arg4: memref<32x32xf32, #tpu.memory_space<vmem>>, %arg5: memref<32x1xf32, #tpu.memory_space<vmem>>, %arg6: memref<64x32xf32, #tpu.memory_space<vmem>>, %arg7: memref<64x1xf32, #tpu.memory_space<vmem>>, %arg8: memref<1x32x128xf32, #tpu.memory_space<vmem>>) attributes {dimension_semantics = [#tpu.dimension_semantics<parallel>, #tpu.dimension_semantics<parallel>], iteration_bounds = array<i64: 2, 2>, scalar_prefetch = 0 : i64, scratch_operands = 0 : i64, tpu.core_type = #tpu.core_type<tc>, window_params = [{transform_indices = @transform_0, window_bounds = array<i64: 1, 32, 128>}, {transform_indices = @transform_1, window_bounds = array<i64: 1, 32, 128>}, {pipeline_mode = #tpu.pipeline_mode<synchronous>, transform_indices = @transform_2, window_bounds = array<i64: 32, 32>}, {pipeline_mode = #tpu.pipeline_mode<synchronous>, transform_indices = @transform_3, window_bounds = array<i64: 32, 1>}, {pipeline_mode = #tpu.pipeline_mode<synchronous>, transform_indices = @transform_4, window_bounds = array<i64: 64, 32>}, {pipeline_mode = #tpu.pipeline_mode<synchronous>, transform_indices = @transform_5, window_bounds = array<i64: 64, 1>}, {transform_indices = @transform_6, window_bounds = array<i64: 1, 32, 128>}]} {
    %c0 = arith.constant 0 : index
    %c0_0 = arith.constant 0 : index
    %c0_1 = arith.constant 0 : index
    %0 = vector.load %arg3[%c0, %c0_0, %c0_1] : memref<1x32x128xf32, #tpu.memory_space<vmem>>, vector<1x32x128xf32>
    %1 = vector.shape_cast %0 : vector<1x32x128xf32> to vector<32x128xf32>
    %c0_2 = arith.constant 0 : index
    %c0_3 = arith.constant 0 : index
    %c0_4 = arith.constant 0 : index
    %2 = vector.load %arg2[%c0_2, %c0_3, %c0_4] : memref<1x32x128xf32, #tpu.memory_space<vmem>>, vector<1x32x128xf32>
    %3 = vector.shape_cast %2 : vector<1x32x128xf32> to vector<32x128xf32>
    %c0_5 = arith.constant 0 : index
    %c0_6 = arith.constant 0 : index
    %4 = vector.load %arg4[%c0_5, %c0_6] : memref<32x32xf32, #tpu.memory_space<vmem>>, vector<32x32xf32>
    %cst = arith.constant dense<0.000000e+00> : vector<32x128xf32>
    %5 = tpu.matmul %4, %1, %cst {dimension_numbers = #tpu.dot_dimension_numbers<[1], [0], [0], [1], [0, 0, 1, 1], [], []>} : vector<32x32xf32>, vector<32x128xf32>, vector<32x128xf32> -> vector<32x128xf32>
    %c0_7 = arith.constant 0 : index
    %c0_8 = arith.constant 0 : index
    %6 = vector.load %arg5[%c0_7, %c0_8] : memref<32x1xf32, #tpu.memory_space<vmem>>, vector<32x1xf32>
    %7 = vector.broadcast %6 : vector<32x1xf32> to vector<32x128xf32>
    %8 = arith.addf %5, %7 : vector<32x128xf32>
    %cst_9 = arith.constant 0.000000e+00 : f32
    %9 = vector.broadcast %cst_9 : f32 to vector<32x128xf32>
    %10 = arith.maximumf %8, %9 : vector<32x128xf32>
    %c0_10 = arith.constant 0 : index
    %c0_11 = arith.constant 0 : index
    %11 = vector.load %arg6[%c0_10, %c0_11] : memref<64x32xf32, #tpu.memory_space<vmem>>, vector<64x32xf32>
    %cst_12 = arith.constant dense<0.000000e+00> : vector<64x128xf32>
    %12 = tpu.matmul %11, %10, %cst_12 {dimension_numbers = #tpu.dot_dimension_numbers<[1], [0], [0], [1], [0, 0, 1, 1], [], []>} : vector<64x32xf32>, vector<32x128xf32>, vector<64x128xf32> -> vector<64x128xf32>
    %c0_13 = arith.constant 0 : index
    %c0_14 = arith.constant 0 : index
    %13 = vector.load %arg7[%c0_13, %c0_14] : memref<64x1xf32, #tpu.memory_space<vmem>>, vector<64x1xf32>
    %14 = vector.broadcast %13 : vector<64x1xf32> to vector<64x128xf32>
    %15 = arith.addf %12, %14 : vector<64x128xf32>
    %16 = vector.extract_strided_slice %15 {offsets = [0, 0], sizes = [32, 128], strides = [1, 1]} : vector<64x128xf32> to vector<32x128xf32>
    %17 = vector.extract_strided_slice %15 {offsets = [32, 0], sizes = [32, 128], strides = [1, 1]} : vector<64x128xf32> to vector<32x128xf32>
    %cst_15 = arith.constant 1.000000e+00 : f32
    %18 = vector.broadcast %cst_15 : f32 to vector<32x128xf32>
    %19 = arith.addf %16, %18 : vector<32x128xf32>
    %20 = arith.mulf %3, %19 : vector<32x128xf32>
    %21 = arith.addf %20, %17 : vector<32x128xf32>
    %c0_16 = arith.constant 0 : index
    %c0_17 = arith.constant 0 : index
    %c0_18 = arith.constant 0 : index
    %22 = vector.load %arg8[%c0_16, %c0_17, %c0_18] : memref<1x32x128xf32, #tpu.memory_space<vmem>>, vector<1x32x128xf32>
    %23 = vector.shape_cast %22 : vector<1x32x128xf32> to vector<32x128xf32>
    %24 = vector.shape_cast %21 : vector<32x128xf32> to vector<1x32x128xf32>
    tpu.vector_store %arg8[%c0_16, %c0_17, %c0_18], %24 {strides = array<i32>} : memref<1x32x128xf32, #tpu.memory_space<vmem>>, vector<1x32x128xf32>,
    return
  }
  func.func @transform_0(%arg0: i32, %arg1: i32) -> (i32, i32, i32) {
    %c0_i32 = arith.constant 0 : i32
    %c0_i32_0 = arith.constant 0 : i32
    return %arg0, %c0_i32, %arg1 : i32, i32, i32
  }
  func.func @transform_1(%arg0: i32, %arg1: i32) -> (i32, i32, i32) {
    %c0_i32 = arith.constant 0 : i32
    %c0_i32_0 = arith.constant 0 : i32
    return %arg0, %c0_i32, %arg1 : i32, i32, i32
  }
  func.func @transform_2(%arg0: i32, %arg1: i32) -> (i32, i32) {
    %c0_i32 = arith.constant 0 : i32
    %c0_i32_0 = arith.constant 0 : i32
    %c0_i32_1 = arith.constant 0 : i32
    return %c0_i32, %c0_i32_0 : i32, i32
  }
  func.func @transform_3(%arg0: i32, %arg1: i32) -> (i32, i32) {
    %c0_i32 = arith.constant 0 : i32
    %c0_i32_0 = arith.constant 0 : i32
    %c0_i32_1 = arith.constant 0 : i32
    return %c0_i32, %c0_i32_0 : i32, i32
  }
  func.func @transform_4(%arg0: i32, %arg1: i32) -> (i32, i32) {
    %c0_i32 = arith.constant 0 : i32
    %c0_i32_0 = arith.constant 0 : i32
    %c0_i32_1 = arith.constant 0 : i32
    return %c0_i32, %c0_i32_0 : i32, i32
  }
  func.func @transform_5(%arg0: i32, %arg1: i32) -> (i32, i32) {
    %c0_i32 = arith.constant 0 : i32
    %c0_i32_0 = arith.constant 0 : i32
    %c0_i32_1 = arith.constant 0 : i32
    return %c0_i32, %c0_i32_0 : i32, i32
  }
  func.func @transform_6(%arg0: i32, %arg1: i32) -> (i32, i32, i32) {
    %c0_i32 = arith.constant 0 : i32
    %c0_i32_0 = arith.constant 0 : i32
    return %arg0, %c0_i32, %arg1 : i32, i32, i32
  }
}

</mosaic_0001>

<llo_original>
// kernel: tpu_custom_call.1
$region0: #{tpu_custom_call.1}
  #allocation0 [shape = 'u32[]', space=smem, size = 0x4, offset = 0x4, fixed_abs, tag = 'smem constant byte address 0x4 - core index']
  #allocation1 [shape = 'u32[144,128]{1,0:T(1,128)}', space=vmem, size = 0x12000, scoped, tag = 'internal scratch']
  %s0 = inlined_call_operand.vmem [shape: f32[2,32,256], index: 0, kind: input, shape index: {}]
  %s1 = inlined_call_operand.hbm [shape: f32[2,32,256], index: 1, kind: input, shape index: {}]
  %s2 = inlined_call_operand.vmem [shape: f32[32,32], index: 2, kind: input, shape index: {}]
  %s3 = inlined_call_operand.vmem [shape: f32[32,1], index: 3, kind: input, shape index: {}]
  %s4 = inlined_call_operand.vmem [shape: f32[64,32], index: 4, kind: input, shape index: {}]
  %s5 = inlined_call_operand.vmem [shape: f32[64,1], index: 5, kind: input, shape index: {}]
  %s6 = inlined_call_operand.hbm [shape: f32[2,32,256], index: 6, kind: output, shape index: {}]
  %s7 = sld [smem:[#allocation0]]
  $region99: #{tpu_custom_call.1} parent=0
    _
  %s9 = ssub.s32 1, %s7
  %s10 = scalar_select 0, %s9, %s7
  $region1: #{tpu_custom_call.1} parent=0
    #allocation2 [shape = 'u8[32768]{0}', space=vmem, size = 0x8000, scoped, tag = 'input window, operand 0']
    #allocation3 [shape = 'u8[32768]{0}', space=vmem, size = 0x8000, scoped, tag = 'input window, operand 1']
    #allocation4 [shape = 's32[2]{0}', space=sflag, size = 0x8, scoped, tag = 'scoped memory for tpu_custom_call.1']
    #allocation5 [shape = 's32[2]{0}', space=sflag, size = 0x8, scoped, tag = 'scoped memory for tpu_custom_call.1']
    #allocation6 [shape = 'u8[32768]{0}', space=vmem, size = 0x8000, scoped, tag = 'output window, operand 0']
    %11 = vsyncpa [#allocation4], 0
    %s12 = scalar_lea.sflag [#allocation4], 1
    %13 = vsyncpa %s12, 0
    %14 = vsyncpa [#allocation5], 0
    %s15 = scalar_lea.sflag [#allocation5], 1
    %16 = vsyncpa %s15, 0
    loop: start=0, step=1, limit=6
    $region2: #{tpu_custom_call.1} parent=1 // loop_pre_header
      _
    $region3: #{tpu_custom_call.1} parent=1 // loop_header
      %s18 = sphi 0, %s22
      %p19 = scmp.ge.s32.totalorder %s18, 6
      %s25 = sphi 0, %s37
      %s26 = sphi 0, %s33
      %s27 = sphi 0, %s25
      %s28 = sphi 0, %s26
      %s29 = sphi 0, %s27
      %s30 = sphi 0, %s28
      %s42 = sphi 0, %s44
      %s45 = sphi 0, %s42
      %s46 = sphi 0, %s45
      %s62 = sphi 0, %s46
      %s70 = sphi 0, %s72
      %s73 = sphi 0, %s70
      %s74 = sphi 0, %s73
      %s90 = sphi 0, %s74
      %s94 = sphi 0, %s94
      %s96 = sphi 0, %s94
      %s97 = sphi 0, %s96
      %s111 = sphi 0, %s97
      %s115 = sphi 0, %s115
      %s117 = sphi 0, %s115
      %s118 = sphi 0, %s117
      %s132 = sphi 0, %s118
      %s136 = sphi 0, %s136
      %s138 = sphi 0, %s136
      %s139 = sphi 0, %s138
      %s153 = sphi 0, %s139
      %s157 = sphi 0, %s157
      %s159 = sphi 0, %s157
      %s160 = sphi 0, %s159
      %s174 = sphi 0, %s160
      %s182 = sphi 0, %s184
      %s185 = sphi 0, %s182
      %s186 = sphi 0, %s185
      %s202 = sphi 0, %s186
    $region4: #{tpu_custom_call.1} parent=1 // loop_header_branch
      %21 = sbr.rel (%p19) target = $region8
    $region5: #{tpu_custom_call.1} parent=1 // loop_body
      %s23 = ssub.s32 %s18, 1
      %s24 = ssub.s32 %s18, 2
      %s31 = sadd.s32 1, %s26
      %p32 = scmp.ge.s32.totalorder %s31, 2
      %s33 = scalar_select %p32, 0, %s31
      %s34 = sadd.s32 1, %s25
      %s35 = scalar_select %p32, %s34, %s25
      %p36 = scmp.ge.s32.totalorder %s35, 2
      %s37 = scalar_select %p36, 0, %s35
      %s38 = ssub.s32 %s25, %s37
      %s39 = ssub.s32 %s26, %s33
      %s40 = sor.u32 %s38, %s39
      %p41 = scmp.eq.s32.totalorder %s40, 0
      %s43 = sadd.s32 %s42, 1
      %s44 = scalar_select %p41, %s42, %s43
      %p47 = pneg %p41
      %p48 = scmp.eq.s32.totalorder %s18, 3
      %p49 = por %p47, %p48
      %p50 = scmp.ne.s32.totalorder %s42, %s45
      %p51 = scmp.eq.s32.totalorder %s18, 0
      %p52 = por %p50, %p51
      %p53 = scmp.ne.s32.totalorder %s42, %s45
      %p54 = scmp.eq.s32.totalorder %s23, 3
      %p55 = por %p53, %p54
      %p56 = scmp.ne.s32.totalorder %s45, %s46
      %p57 = scmp.eq.s32.totalorder %s23, 0
      %p58 = por %p56, %p57
      %p59 = scmp.ne.s32.totalorder %s45, %s46
      %p60 = scmp.eq.s32.totalorder %s24, 3
      %p61 = por %p59, %p60
      %p63 = scmp.ne.s32.totalorder %s46, %s62
      %p64 = scmp.eq.s32.totalorder %s24, 0
      %p65 = por %p63, %p64
      %s66 = ssub.s32 %s25, %s37
      %s67 = ssub.s32 %s26, %s33
      %s68 = sor.u32 %s66, %s67
      %p69 = scmp.eq.s32.totalorder %s68, 0
      %s71 = sadd.s32 %s70, 1
      %s72 = scalar_select %p69, %s70, %s71
      %p75 = pneg %p69
      %p76 = scmp.eq.s32.totalorder %s18, 3
      %p77 = por %p75, %p76
      %p78 = scmp.ne.s32.totalorder %s70, %s73
      %p79 = scmp.eq.s32.totalorder %s18, 0
      %p80 = por %p78, %p79
      %p81 = scmp.ne.s32.totalorder %s70, %s73
      %p82 = scmp.eq.s32.totalorder %s23, 3
      %p83 = por %p81, %p82
      %p84 = scmp.ne.s32.totalorder %s73, %s74
      %p85 = scmp.eq.s32.totalorder %s23, 0
      %p86 = por %p84, %p85
      %p87 = scmp.ne.s32.totalorder %s73, %s74
      %p88 = scmp.eq.s32.totalorder %s24, 3
      %p89 = por %p87, %p88
      %p91 = scmp.ne.s32.totalorder %s74, %s90
      %p92 = scmp.eq.s32.totalorder %s24, 0
      %p93 = por %p91, %p92
      %s95 = sadd.s32 %s94, 1
      %p98 = scmp.eq.s32.totalorder %s18, 3
      %p99 = scmp.ne.s32.totalorder %s94, %s96
      %p100 = scmp.eq.s32.totalorder %s18, 0
      %p101 = por %p99, %p100
      %p102 = scmp.ne.s32.totalorder %s94, %s96
      %p103 = scmp.eq.s32.totalorder %s23, 3
      %p104 = por %p102, %p103
      %p105 = scmp.ne.s32.totalorder %s96, %s97
      %p106 = scmp.eq.s32.totalorder %s23, 0
      %p107 = por %p105, %p106
      %p108 = scmp.ne.s32.totalorder %s96, %s97
      %p109 = scmp.eq.s32.totalorder %s24, 3
      %p110 = por %p108, %p109
      %p112 = scmp.ne.s32.totalorder %s97, %s111
      %p113 = scmp.eq.s32.totalorder %s24, 0
      %p114 = por %p112, %p113
      %s116 = sadd.s32 %s115, 1
      %p119 = scmp.eq.s32.totalorder %s18, 3
      %p120 = scmp.ne.s32.totalorder %s115, %s117
      %p121 = scmp.eq.s32.totalorder %s18, 0
      %p122 = por %p120, %p121
      %p123 = scmp.ne.s32.totalorder %s115, %s117
      %p124 = scmp.eq.s32.totalorder %s23, 3
      %p125 = por %p123, %p124
      %p126 = scmp.ne.s32.totalorder %s117, %s118
      %p127 = scmp.eq.s32.totalorder %s23, 0
      %p128 = por %p126, %p127
      %p129 = scmp.ne.s32.totalorder %s117, %s118
      %p130 = scmp.eq.s32.totalorder %s24, 3
      %p131 = por %p129, %p130
      %p133 = scmp.ne.s32.totalorder %s118, %s132
      %p134 = scmp.eq.s32.totalorder %s24, 0
      %p135 = por %p133, %p134
      %s137 = sadd.s32 %s136, 1
      %p140 = scmp.eq.s32.totalorder %s18, 3
      %p141 = scmp.ne.s32.totalorder %s136, %s138
      %p142 = scmp.eq.s32.totalorder %s18, 0
      %p143 = por %p141, %p142
      %p144 = scmp.ne.s32.totalorder %s136, %s138
      %p145 = scmp.eq.s32.totalorder %s23, 3
      %p146 = por %p144, %p145
      %p147 = scmp.ne.s32.totalorder %s138, %s139
      %p148 = scmp.eq.s32.totalorder %s23, 0
      %p149 = por %p147, %p148
      %p150 = scmp.ne.s32.totalorder %s138, %s139
      %p151 = scmp.eq.s32.totalorder %s24, 3
      %p152 = por %p150, %p151
      %p154 = scmp.ne.s32.totalorder %s139, %s153
      %p155 = scmp.eq.s32.totalorder %s24, 0
      %p156 = por %p154, %p155
      %s158 = sadd.s32 %s157, 1
      %p161 = scmp.eq.s32.totalorder %s18, 3
      %p162 = scmp.ne.s32.totalorder %s157, %s159
      %p163 = scmp.eq.s32.totalorder %s18, 0
      %p164 = por %p162, %p163
      %p165 = scmp.ne.s32.totalorder %s157, %s159
      %p166 = scmp.eq.s32.totalorder %s23, 3
      %p167 = por %p165, %p166
      %p168 = scmp.ne.s32.totalorder %s159, %s160
      %p169 = scmp.eq.s32.totalorder %s23, 0
      %p170 = por %p168, %p169
      %p171 = scmp.ne.s32.totalorder %s159, %s160
      %p172 = scmp.eq.s32.totalorder %s24, 3
      %p173 = por %p171, %p172
      %p175 = scmp.ne.s32.totalorder %s160, %s174
      %p176 = scmp.eq.s32.totalorder %s24, 0
      %p177 = por %p175, %p176
      %s178 = ssub.s32 %s25, %s37
      %s179 = ssub.s32 %s26, %s33
      %s180 = sor.u32 %s178, %s179
      %p181 = scmp.eq.s32.totalorder %s180, 0
      %s183 = sadd.s32 %s182, 1
      %s184 = scalar_select %p181, %s182, %s183
      %p187 = pneg %p181
      %p188 = scmp.eq.s32.totalorder %s18, 3
      %p189 = por %p187, %p188
      %p190 = scmp.ne.s32.totalorder %s182, %s185
      %p191 = scmp.eq.s32.totalorder %s18, 0
      %p192 = por %p190, %p191
      %p193 = scmp.ne.s32.totalorder %s182, %s185
      %p194 = scmp.eq.s32.totalorder %s23, 3
      %p195 = por %p193, %p194
      %p196 = scmp.ne.s32.totalorder %s185, %s186
      %p197 = scmp.eq.s32.totalorder %s23, 0
      %p198 = por %p196, %p197
      %p199 = scmp.ne.s32.totalorder %s185, %s186
      %p200 = scmp.eq.s32.totalorder %s24, 3
      %p201 = por %p199, %p200
      %p203 = scmp.ne.s32.totalorder %s186, %s202
      %p204 = scmp.eq.s32.totalorder %s24, 0
      %p205 = por %p203, %p204
      %p206 = scmp.le.s32.totalorder 1, %s18
      %p207 = scmp.lt.s32.totalorder %s18, 5
      %p208 = pnand %p206, %p207
      %p209 = pneg %p208
      // Predicated region
      $region9: #{tpu_custom_call.1} parent=5 // pred_check
        _
      $region10: #{tpu_custom_call.1} parent=5 // pred_check_branch
        %211 = sbr.rel (%p208) target = $region12
      $region11: #{tpu_custom_call.1} parent=5 // pred_region
        %s212 = ssub.s32 %s18, 1
        // Predicated region
        $region13: #{tpu_custom_call.1} parent=11 // pred_check
          %p213 = pneg %p107
        $region14: #{tpu_custom_call.1} parent=11 // pred_check_branch
          %215 = sbr.rel (%p213) target = $region16
        $region15: #{tpu_custom_call.1} parent=11 // pred_region
          _
        $region16: #{tpu_custom_call.1} parent=11 // pred_fallthru
          _
        // Predicated region
        $region17: #{tpu_custom_call.1} parent=11 // pred_check
          %p216 = pneg %p128
        $region18: #{tpu_custom_call.1} parent=11 // pred_check_branch
          %218 = sbr.rel (%p216) target = $region20
        $region19: #{tpu_custom_call.1} parent=11 // pred_region
          _
        $region20: #{tpu_custom_call.1} parent=11 // pred_fallthru
          _
        // Predicated region
        $region21: #{tpu_custom_call.1} parent=11 // pred_check
          %p219 = pneg %p149
        $region22: #{tpu_custom_call.1} parent=11 // pred_check_branch
          %221 = sbr.rel (%p219) target = $region24
        $region23: #{tpu_custom_call.1} parent=11 // pred_region
          _
        $region24: #{tpu_custom_call.1} parent=11 // pred_fallthru
          _
        // Predicated region
        $region25: #{tpu_custom_call.1} parent=11 // pred_check
          %p222 = pneg %p170
        $region26: #{tpu_custom_call.1} parent=11 // pred_check_branch
          %224 = sbr.rel (%p222) target = $region28
        $region27: #{tpu_custom_call.1} parent=11 // pred_region
          _
        $region28: #{tpu_custom_call.1} parent=11 // pred_fallthru
          _
      $region12: #{tpu_custom_call.1} parent=5 // pred_fallthru
        _
      %p225 = scmp.lt.s32.totalorder %s18, 4
      // Predicated region
      $region29: #{tpu_custom_call.1} parent=5 // pred_check
        %p226 = pneg %p225
      $region30: #{tpu_custom_call.1} parent=5 // pred_check_branch
        %228 = sbr.rel (%p226) target = $region32
      $region31: #{tpu_custom_call.1} parent=5 // pred_region
        // Predicated region
        $region33: #{tpu_custom_call.1} parent=31 // pred_check
          %p229 = pneg %p52
        $region34: #{tpu_custom_call.1} parent=31 // pred_check_branch
          %231 = sbr.rel (%p229) target = $region36
        $region35: #{tpu_custom_call.1} parent=31 // pred_region
          %s232 = sand.u32 %s42, 1
          %s233 = sand.u32 %s42, 1
          %s234 = smul.addr %s233, 32
          %s235 = scalar_lea.vmem [#allocation2], %s234
          %s236 = smul.addr %s25, 8
          %s237 = sadd.s32 %s26, %s236
          %s238 = smul.addr %s237, 8
          %s239 = scalar_lea.vmem %s0, %s238
          // Predicated region
          $region37: #{tpu_custom_call.1} parent=35 // pred_check
            _
          $region38: #{tpu_custom_call.1} parent=35 // pred_check_branch
            %241 = sbr.rel (0) target = $region40
          $region39: #{tpu_custom_call.1} parent=35 // pred_region
            // Predicated region
            $region41: #{tpu_custom_call.1} parent=39 // pred_check
              _
            $region42: #{tpu_custom_call.1} parent=39 // pred_check_branch
              %243 = sbr.rel (0) target = $region44
            $region43: #{tpu_custom_call.1} parent=39 // pred_region
              // Predicated region
              $region56: #{tpu_custom_call.1} parent=43 // pred_check
                _
              $region57: #{tpu_custom_call.1} parent=43 // pred_check_branch
                %264 = sbr.rel (0) target = $region59
              $region58: #{tpu_custom_call.1} parent=43 // pred_region
                loop: start=0, step=1, limit=1
                $region60: #{tpu_custom_call.1} parent=58 // loop_pre_header
                  _
                $region61: #{tpu_custom_call.1} parent=58 // loop_header
                  %s266 = sphi 0, %s270
                  %p267 = scmp.ge.s32.totalorder %s266, 1
                  %s271 = sphi %s239, %s239
                  %s272 = sphi %s235, %s235
                $region62: #{tpu_custom_call.1} parent=58 // loop_header_branch
                  %269 = sbr.rel (%p267) target = $region66
                $region63: #{tpu_custom_call.1} parent=58 // loop_body
                  %v273 = vld [vmem:[%s271] sm:$0xff]
                  %274 = vst [vmem:[%s272] sm:$0xff] %v273
                  %v275 = vld [vmem:[%s271 + $0x10] sm:$0xff]
                  %276 = vst [vmem:[%s272 + $0x8] sm:$0xff] %v275
                  %v277 = vld [vmem:[%s271 + $0x20] sm:$0xff]
                  %278 = vst [vmem:[%s272 + $0x10] sm:$0xff] %v277
                  %v279 = vld [vmem:[%s271 + $0x30] sm:$0xff]
                  %280 = vst [vmem:[%s272 + $0x18] sm:$0xff] %v279
                $region64: #{tpu_custom_call.1} parent=58 // loop_footer
                  %s270 = sadd.s32 1, %s266
                $region65: #{tpu_custom_call.1} parent=58 // loop_footer_branch
                  %265 = sbr.rel target = $region61
                $region66: #{tpu_custom_call.1} parent=58 // loop_exit
                  _
              $region59: #{tpu_custom_call.1} parent=43 // pred_fallthru
                _
              // Predicated region
              $region67: #{tpu_custom_call.1} parent=43 // pred_check
                _
              $region68: #{tpu_custom_call.1} parent=43 // pred_check_branch
                %282 = sbr.rel target = $region70
              $region69: #{tpu_custom_call.1} parent=43 // pred_region
                _
              $region70: #{tpu_custom_call.1} parent=43 // pred_fallthru
                _
            $region44: #{tpu_custom_call.1} parent=39 // pred_fallthru
              _
            // Predicated region
            $region45: #{tpu_custom_call.1} parent=39 // pred_check
              _
            $region46: #{tpu_custom_call.1} parent=39 // pred_check_branch
              %245 = sbr.rel target = $region48
            $region47: #{tpu_custom_call.1} parent=39 // pred_region
              loop: start=0, step=1, limit=1
              $region49: #{tpu_custom_call.1} parent=47 // loop_pre_header
                _
              $region50: #{tpu_custom_call.1} parent=47 // loop_header
                %s248 = sphi 0, %s252
                %p249 = scmp.ge.s32.totalorder %s248, 1
                %s253 = sphi %s239, %s239
                %s254 = sphi %s235, %s235
              $region51: #{tpu_custom_call.1} parent=47 // loop_header_branch
                %251 = sbr.rel (%p249) target = $region55
              $region52: #{tpu_custom_call.1} parent=47 // loop_body
                %v255 = vld [vmem:[%s253] sm:$0xff]
                %256 = vst [vmem:[%s254] sm:$0xff] %v255
                %v257 = vld [vmem:[%s253 + $0x10] sm:$0xff]
                %258 = vst [vmem:[%s254 + $0x8] sm:$0xff] %v257
                %v259 = vld [vmem:[%s253 + $0x20] sm:$0xff]
                %260 = vst [vmem:[%s254 + $0x10] sm:$0xff] %v259
                %v261 = vld [vmem:[%s253 + $0x30] sm:$0xff]
                %262 = vst [vmem:[%s254 + $0x18] sm:$0xff] %v261
              $region53: #{tpu_custom_call.1} parent=47 // loop_footer
                %s252 = sadd.s32 1, %s248
              $region54: #{tpu_custom_call.1} parent=47 // loop_footer_branch
                %247 = sbr.rel target = $region50
              $region55: #{tpu_custom_call.1} parent=47 // loop_exit
                _
            $region48: #{tpu_custom_call.1} parent=39 // pred_fallthru
              _
          $region40: #{tpu_custom_call.1} parent=35 // pred_fallthru
            _
          %283 = vnop
        $region36: #{tpu_custom_call.1} parent=31 // pred_fallthru
          _
        // Predicated region
        $region71: #{tpu_custom_call.1} parent=31 // pred_check
          %p284 = pneg %p80
        $region72: #{tpu_custom_call.1} parent=31 // pred_check_branch
          %286 = sbr.rel (%p284) target = $region74
        $region73: #{tpu_custom_call.1} parent=31 // pred_region
          %s287 = sand.u32 %s70, 1
          %s288 = scalar_lea.sflag [#allocation4], %s287
          %s289 = sand.u32 %s70, 1
          %s290 = smul.addr %s289, 32
          %s291 = scalar_lea.vmem [#allocation3], %s290
          %s293 = ssub.s32 512, 512
          %294 = vsyncadd %s288, %s293
          %s295 = smul.addr %s25, 8
          %s296 = sadd.s32 %s26, %s295
          %s297 = smul.addr %s296, 128
          %s298 = scalar_lea.hbm %s1, %s297
          %s299 = sshll.u32 %s291, 4
          %s300 = int_to_ptr.vmem [resolvable:$true] %s299
          %305 = dma.hbm_to_vmem [thread:$0]  %s298, 512, %s300, %s288, 256, 128, 8
        $region74: #{tpu_custom_call.1} parent=31 // pred_fallthru
          _
      $region32: #{tpu_custom_call.1} parent=5 // pred_fallthru
        _
      %p306 = scmp.le.s32.totalorder 1, %s18
      %p307 = scmp.lt.s32.totalorder %s18, 5
      %p308 = pnand %p306, %p307
      %p309 = pneg %p308
      // Predicated region
      $region75: #{tpu_custom_call.1} parent=5 // pred_check
        _
      $region76: #{tpu_custom_call.1} parent=5 // pred_check_branch
        %311 = sbr.rel (%p308) target = $region78
      $region77: #{tpu_custom_call.1} parent=5 // pred_region
        %s312 = ssub.s32 %s18, 1
        %s313 = sand.u32 %s45, 1
        %s314 = sand.u32 %s45, 1
        %s315 = smul.addr %s314, 32
        %s316 = scalar_lea.vmem [#allocation2], %s315
        // Predicated region
        $region79: #{tpu_custom_call.1} parent=77 // pred_check
          %p317 = pneg %p58
        $region80: #{tpu_custom_call.1} parent=77 // pred_check_branch
          %319 = sbr.rel (%p317) target = $region82
        $region81: #{tpu_custom_call.1} parent=77 // pred_region
          _
        $region82: #{tpu_custom_call.1} parent=77 // pred_fallthru
          _
        %s320 = sand.u32 %s73, 1
        %s321 = scalar_lea.sflag [#allocation4], %s320
        %s322 = sand.u32 %s73, 1
        %s323 = smul.addr %s322, 32
        %s324 = scalar_lea.vmem [#allocation3], %s323
        // Predicated region
        $region83: #{tpu_custom_call.1} parent=77 // pred_check
          %p325 = pneg %p86
        $region84: #{tpu_custom_call.1} parent=77 // pred_check_branch
          %327 = sbr.rel (%p325) target = $region86
        $region85: #{tpu_custom_call.1} parent=77 // pred_region
          %328 = dma.done %s321, 512
        $region86: #{tpu_custom_call.1} parent=77 // pred_fallthru
          _
        %s329 = sand.u32 %s45, 1
        %s330 = sand.u32 %s45, 1
        %s331 = smul.addr %s330, 32
        %s332 = scalar_lea.vmem [#allocation2], %s331
        %p333 = pneg %p58
        %p334 = pneg %p55
        %s335 = sand.u32 %s73, 1
        %s336 = scalar_lea.sflag [#allocation4], %s335
        %s337 = sand.u32 %s73, 1
        %s338 = smul.addr %s337, 32
        %s339 = scalar_lea.vmem [#allocation3], %s338
        %p340 = pneg %p86
        %p341 = pneg %p83
        %p342 = pneg %p107
        %p343 = pneg %p104
        %p344 = pneg %p128
        %p345 = pneg %p125
        %p346 = pneg %p149
        %p347 = pneg %p146
        %p348 = pneg %p170
        %p349 = pneg %p167
        %p350 = pneg %p198
        %p351 = pneg %p195
        %s352 = sand.u32 %s185, 1
        %s353 = scalar_lea.sflag [#allocation5], %s352
        %s354 = sand.u32 %s185, 1
        %s355 = smul.addr %s354, 32
        %s356 = scalar_lea.vmem [#allocation6], %s355
        %v357 = vld [vmem:[%s324] sm:$0xff]
        %v358 = vld [vmem:[%s324 + $0x8] sm:$0xff]
        %v359 = vld [vmem:[%s324 + $0x10] sm:$0xff]
        %v360 = vld [vmem:[%s324 + $0x18] sm:$0xff]
        %v361 = vld [vmem:[%s316] sm:$0xff]
        %v362 = vld [vmem:[%s316 + $0x8] sm:$0xff]
        %v363 = vld [vmem:[%s316 + $0x10] sm:$0xff]
        %v364 = vld [vmem:[%s316 + $0x18] sm:$0xff]
        %v365 = vld [vmem:[%s2] sm:$0xff]
        %v366 = vld [vmem:[%s2 + $0x8] sm:$0xff]
        %v367 = vld [vmem:[%s2 + $0x10] sm:$0xff]
        %v368 = vld [vmem:[%s2 + $0x18] sm:$0xff]
        %v369 = vld [vmem:[%s3] sm:$0xff]
        %v370 = vld [vmem:[%s3 + $0x8] sm:$0xff]
        %v371 = vld [vmem:[%s3 + $0x10] sm:$0xff]
        %v372 = vld [vmem:[%s3 + $0x18] sm:$0xff]
        %374 = vset.pattern.permute.xlu0 0
        %375 = vperm.xlu0 %374, %v369
        %v376 = vpop.permute.xlu0 %375
        %379 = vset.pattern.permute.xlu0 0
        %380 = vperm.xlu0 %379, %v370
        %v381 = vpop.permute.xlu0 %380
        %384 = vset.pattern.permute.xlu0 0
        %385 = vperm.xlu0 %384, %v371
        %v386 = vpop.permute.xlu0 %385
        %389 = vset.pattern.permute.xlu0 0
        %390 = vperm.xlu0 %389, %v372
        %v391 = vpop.permute.xlu0 %390
        %vm393 = vcmask 261120
        %v395 = vsel %vm393, %v365, 0
        %v398 = vsel %vm393, %v366, 0
        %v401 = vsel %vm393, %v367, 0
        %v404 = vsel %vm393, %v368, 0
        %406 = vmatprep.subr.mxu0 0.0
        %407 = vmatpush1.msra.mxu0 %v357
        %408 = vmatprep.subr.mxu0 0.0
        %409 = vmatpush1.msra.mxu0 %v358
        %410 = vmatprep.subr.mxu0 0.0
        %411 = vmatpush1.msra.mxu0 %v359
        %412 = vmatprep.subr.mxu0 0.0
        %413 = vmatpush1.msra.mxu0 %v360
        %414 = vmatprep.subr.mxu0 0.0
        %415 = vmatpush1.msra.mxu0 0.0
        %416 = vmatprep.subr.mxu0 0.0
        %417 = vmatpush1.msra.mxu0 0.0
        %418 = vmatprep.subr.mxu0 0.0
        %419 = vmatpush1.msra.mxu0 0.0
        %420 = vmatprep.subr.mxu0 0.0
        %421 = vmatpush1.msra.mxu0 0.0
        %422 = vmatprep.subr.mxu0 0.0
        %423 = vmatpush1.msra.mxu0 0.0
        %424 = vmatprep.subr.mxu0 0.0
        %425 = vmatpush1.msra.mxu0 0.0
        %426 = vmatprep.subr.mxu0 0.0
        %427 = vmatpush1.msra.mxu0 0.0
        %428 = vmatprep.subr.mxu0 0.0
        %429 = vmatpush1.msra.mxu0 0.0
        %430 = vmatprep.subr.mxu0 0.0
        %431 = vmatpush1.msra.mxu0 0.0
        %432 = vmatprep.subr.mxu0 0.0
        %433 = vmatpush1.msra.mxu0 0.0
        %434 = vmatprep.subr.mxu0 0.0
        %435 = vmatpush1.msra.mxu0 0.0
        %436 = vmatprep.subr.mxu0 0.0
        %437 = vmatpush1.msra.mxu0 0.0
        %438 = vmatprep.subr.mxu0 0.0
        %439 = vmatpush1.msra.mxu0 0.0
        %440 = vmatprep.subr.mxu0 0.0
        %441 = vmatpush1.msra.mxu0 0.0
        %442 = vmatprep.subr.mxu0 0.0
        %443 = vmatpush1.msra.mxu0 0.0
        %444 = vmatprep.subr.mxu0 0.0
        %445 = vmatpush1.msra.mxu0 0.0
        %446 = vmatprep.subr.mxu0 0.0
        %447 = vmatpush1.msra.mxu0 0.0
        %448 = vmatprep.subr.mxu0 0.0
        %449 = vmatpush1.msra.mxu0 0.0
        %450 = vmatprep.subr.mxu0 0.0
        %451 = vmatpush1.msra.mxu0 0.0
        %452 = vmatprep.subr.mxu0 0.0
        %453 = vmatpush1.msra.mxu0 0.0
        %454 = vmatprep.subr.mxu0 0.0
        %455 = vmatpush1.msra.mxu0 0.0
        %456 = vmatprep.subr.mxu0 0.0
        %457 = vmatpush1.msra.mxu0 0.0
        %458 = vmatprep.subr.mxu0 0.0
        %459 = vmatpush1.msra.mxu0 0.0
        %460 = vmatprep.subr.mxu0 0.0
        %461 = vmatpush1.msra.mxu0 0.0
        %462 = vmatprep.subr.mxu0 0.0
        %463 = vmatpush1.msra.mxu0 0.0
        %464 = vmatprep.subr.mxu0 0.0
        %465 = vmatpush1.msra.mxu0 0.0
        %466 = vmatprep.subr.mxu0 0.0
        %467 = vmatpush1.msra.mxu0 0.0
        %468 = vmatprep.subr.mxu0 0.0
        %469 = vmatpush1.msra.mxu0 0.0
        %470 = vmatprep.mubr.f32.mxu0 0.0
        %471 = vmatmul.mubr.f32.gmra.mrb[0].mxu0 %v395
        %v472 = vpop.f32.mrb[0].mxu0
        %v473 = vadd.f32 %v376, %v472
        %v474 = vpop.f32.mrb[0].mxu0
        %475 = vmatprep.mubr.f32.mxu0 0.0
        %476 = vmatmul.mubr.f32.gmra.mrb[0].mxu0 %v398
        %v477 = vpop.f32.mrb[0].mxu0
        %v478 = vadd.f32 %v381, %v477
        %v479 = vpop.f32.mrb[0].mxu0
        %480 = vmatprep.mubr.f32.mxu0 0.0
        %481 = vmatmul.mubr.f32.gmra.mrb[0].mxu0 %v401
        %v482 = vpop.f32.mrb[0].mxu0
        %v483 = vadd.f32 %v386, %v482
        %v484 = vpop.f32.mrb[0].mxu0
        %485 = vmatprep.mubr.f32.mxu0 0.0
        %486 = vmatmul.mubr.f32.gmra.mrb[0].mxu0 %v404
        %v487 = vpop.f32.mrb[0].mxu0
        %v488 = vadd.f32 %v391, %v487
        %v489 = vpop.f32.mrb[0].mxu0
        %490 = vdwg.mxu0
        %v491 = vmax.f32 %v473, 0.0
        %v492 = vmax.f32 %v478, 0.0
        %v493 = vmax.f32 %v483, 0.0
        %v494 = vmax.f32 %v488, 0.0
        %v495 = vld [vmem:[%s4] sm:$0xff]
        %v496 = vld [vmem:[%s4 + $0x8] sm:$0xff]
        %v497 = vld [vmem:[%s4 + $0x10] sm:$0xff]
        %v498 = vld [vmem:[%s4 + $0x18] sm:$0xff]
        %v499 = vld [vmem:[%s4 + $0x20] sm:$0xff]
        %v500 = vld [vmem:[%s4 + $0x28] sm:$0xff]
        %v501 = vld [vmem:[%s4 + $0x30] sm:$0xff]
        %v502 = vld [vmem:[%s4 + $0x38] sm:$0xff]
        %v503 = vld [vmem:[%s5] sm:$0xff]
        %v504 = vld [vmem:[%s5 + $0x8] sm:$0xff]
        %v505 = vld [vmem:[%s5 + $0x10] sm:$0xff]
        %v506 = vld [vmem:[%s5 + $0x18] sm:$0xff]
        %v507 = vld [vmem:[%s5 + $0x20] sm:$0xff]
        %v508 = vld [vmem:[%s5 + $0x28] sm:$0xff]
        %v509 = vld [vmem:[%s5 + $0x30] sm:$0xff]
        %v510 = vld [vmem:[%s5 + $0x38] sm:$0xff]
        %512 = vset.pattern.permute.xlu0 0
        %513 = vperm.xlu0 %512, %v503
        %v514 = vpop.permute.xlu0 %513
        %517 = vset.pattern.permute.xlu0 0
        %518 = vperm.xlu0 %517, %v504
        %v519 = vpop.permute.xlu0 %518
        %522 = vset.pattern.permute.xlu0 0
        %523 = vperm.xlu0 %522, %v505
        %v524 = vpop.permute.xlu0 %523
        %527 = vset.pattern.permute.xlu0 0
        %528 = vperm.xlu0 %527, %v506
        %v529 = vpop.permute.xlu0 %528
        %532 = vset.pattern.permute.xlu0 0
        %533 = vperm.xlu0 %532, %v507
        %v534 = vpop.permute.xlu0 %533
        %537 = vset.pattern.permute.xlu0 0
        %538 = vperm.xlu0 %537, %v508
        %v539 = vpop.permute.xlu0 %538
        %542 = vset.pattern.permute.xlu0 0
        %543 = vperm.xlu0 %542, %v509
        %v544 = vpop.permute.xlu0 %543
        %547 = vset.pattern.permute.xlu0 0
        %548 = vperm.xlu0 %547, %v510
        %v549 = vpop.permute.xlu0 %548
        %v552 = vsel %vm393, %v495, 0
        %v555 = vsel %vm393, %v496, 0
        %v558 = vsel %vm393, %v497, 0
        %v561 = vsel %vm393, %v498, 0
        %v564 = vsel %vm393, %v499, 0
        %v567 = vsel %vm393, %v500, 0
        %v570 = vsel %vm393, %v501, 0
        %v573 = vsel %vm393, %v502, 0
        %575 = vmatprep.subr.mxu0 0.0
        %576 = vmatpush1.msra.mxu0 %v491
        %577 = vmatprep.subr.mxu0 0.0
        %578 = vmatpush1.msra.mxu0 %v492
        %579 = vmatprep.subr.mxu0 0.0
        %580 = vmatpush1.msra.mxu0 %v493
        %581 = vmatprep.subr.mxu0 0.0
        %582 = vmatpush1.msra.mxu0 %v494
        %583 = vmatprep.subr.mxu0 0.0
        %584 = vmatpush1.msra.mxu0 0.0
        %585 = vmatprep.subr.mxu0 0.0
        %586 = vmatpush1.msra.mxu0 0.0
        %587 = vmatprep.subr.mxu0 0.0
        %588 = vmatpush1.msra.mxu0 0.0
        %589 = vmatprep.subr.mxu0 0.0
        %590 = vmatpush1.msra.mxu0 0.0
        %591 = vmatprep.subr.mxu0 0.0
        %592 = vmatpush1.msra.mxu0 0.0
        %593 = vmatprep.subr.mxu0 0.0
        %594 = vmatpush1.msra.mxu0 0.0
        %595 = vmatprep.subr.mxu0 0.0
        %596 = vmatpush1.msra.mxu0 0.0
        %597 = vmatprep.subr.mxu0 0.0
        %598 = vmatpush1.msra.mxu0 0.0
        %599 = vmatprep.subr.mxu0 0.0
        %600 = vmatpush1.msra.mxu0 0.0
        %601 = vmatprep.subr.mxu0 0.0
        %602 = vmatpush1.msra.mxu0 0.0
        %603 = vmatprep.subr.mxu0 0.0
        %604 = vmatpush1.msra.mxu0 0.0
        %605 = vmatprep.subr.mxu0 0.0
        %606 = vmatpush1.msra.mxu0 0.0
        %607 = vmatprep.subr.mxu0 0.0
        %608 = vmatpush1.msra.mxu0 0.0
        %609 = vmatprep.subr.mxu0 0.0
        %610 = vmatpush1.msra.mxu0 0.0
        %611 = vmatprep.subr.mxu0 0.0
        %612 = vmatpush1.msra.mxu0 0.0
        %613 = vmatprep.subr.mxu0 0.0
        %614 = vmatpush1.msra.mxu0 0.0
        %615 = vmatprep.subr.mxu0 0.0
        %616 = vmatpush1.msra.mxu0 0.0
        %617 = vmatprep.subr.mxu0 0.0
        %618 = vmatpush1.msra.mxu0 0.0
        %619 = vmatprep.subr.mxu0 0.0
        %620 = vmatpush1.msra.mxu0 0.0
        %621 = vmatprep.subr.mxu0 0.0
        %622 = vmatpush1.msra.mxu0 0.0
        %623 = vmatprep.subr.mxu0 0.0
        %624 = vmatpush1.msra.mxu0 0.0
        %625 = vmatprep.subr.mxu0 0.0
        %626 = vmatpush1.msra.mxu0 0.0
        %627 = vmatprep.subr.mxu0 0.0
        %628 = vmatpush1.msra.mxu0 0.0
        %629 = vmatprep.subr.mxu0 0.0
        %630 = vmatpush1.msra.mxu0 0.0
        %631 = vmatprep.subr.mxu0 0.0
        %632 = vmatpush1.msra.mxu0 0.0
        %633 = vmatprep.subr.mxu0 0.0
        %634 = vmatpush1.msra.mxu0 0.0
        %635 = vmatprep.subr.mxu0 0.0
        %636 = vmatpush1.msra.mxu0 0.0
        %637 = vmatprep.subr.mxu0 0.0
        %638 = vmatpush1.msra.mxu0 0.0
        %639 = vmatprep.mubr.f32.mxu0 0.0
        %640 = vmatmul.mubr.f32.gmra.mrb[0].mxu0 %v552
        %v641 = vpop.f32.mrb[0].mxu0
        %v642 = vadd.f32 %v514, %v641
        %v643 = vpop.f32.mrb[0].mxu0
        %644 = vmatprep.mubr.f32.mxu0 0.0
        %645 = vmatmul.mubr.f32.gmra.mrb[0].mxu0 %v555
        %v646 = vpop.f32.mrb[0].mxu0
        %v647 = vadd.f32 %v519, %v646
        %v648 = vpop.f32.mrb[0].mxu0
        %649 = vmatprep.mubr.f32.mxu0 0.0
        %650 = vmatmul.mubr.f32.gmra.mrb[0].mxu0 %v558
        %v651 = vpop.f32.mrb[0].mxu0
        %v652 = vadd.f32 %v524, %v651
        %v653 = vpop.f32.mrb[0].mxu0
        %654 = vmatprep.mubr.f32.mxu0 0.0
        %655 = vmatmul.mubr.f32.gmra.mrb[0].mxu0 %v561
        %v656 = vpop.f32.mrb[0].mxu0
        %v657 = vadd.f32 %v529, %v656
        %v658 = vpop.f32.mrb[0].mxu0
        %659 = vmatprep.mubr.f32.mxu0 0.0
        %660 = vmatmul.mubr.f32.gmra.mrb[0].mxu0 %v564
        %v661 = vpop.f32.mrb[0].mxu0
        %v662 = vadd.f32 %v534, %v661
        %v663 = vpop.f32.mrb[0].mxu0
        %664 = vmatprep.mubr.f32.mxu0 0.0
        %665 = vmatmul.mubr.f32.gmra.mrb[0].mxu0 %v567
        %v666 = vpop.f32.mrb[0].mxu0
        %v667 = vadd.f32 %v539, %v666
        %v668 = vpop.f32.mrb[0].mxu0
        %669 = vmatprep.mubr.f32.mxu0 0.0
        %670 = vmatmul.mubr.f32.gmra.mrb[0].mxu0 %v570
        %v671 = vpop.f32.mrb[0].mxu0
        %v672 = vadd.f32 %v544, %v671
        %v673 = vpop.f32.mrb[0].mxu0
        %674 = vmatprep.mubr.f32.mxu0 0.0
        %675 = vmatmul.mubr.f32.gmra.mrb[0].mxu0 %v573
        %v676 = vpop.f32.mrb[0].mxu0
        %v677 = vadd.f32 %v549, %v676
        %v678 = vpop.f32.mrb[0].mxu0
        %679 = vdwg.mxu0
        %v680 = vadd.f32 %v642, 1.0
        %v681 = vadd.f32 %v647, 1.0
        %v682 = vadd.f32 %v652, 1.0
        %v683 = vadd.f32 %v657, 1.0
        %v684 = vmul.f32 %v361, %v680
        %v685 = vmul.f32 %v362, %v681
        %v686 = vmul.f32 %v363, %v682
        %v687 = vmul.f32 %v364, %v683
        %v688 = vadd.f32 %v684, %v662
        %v689 = vadd.f32 %v685, %v667
        %v690 = vadd.f32 %v686, %v672
        %v691 = vadd.f32 %v687, %v677
        %692 = vst [vmem:[%s356] sm:$0xff] %v688
        %693 = vst [vmem:[%s356 + $0x8] sm:$0xff] %v689
        %694 = vst [vmem:[%s356 + $0x10] sm:$0xff] %v690
        %695 = vst [vmem:[%s356 + $0x18] sm:$0xff] %v691
        %s696 = sand.u32 %s185, 1
        %s697 = scalar_lea.sflag [#allocation5], %s696
        %s698 = sand.u32 %s185, 1
        %s699 = smul.addr %s698, 32
        %s700 = scalar_lea.vmem [#allocation6], %s699
        // Predicated region
        $region87: #{tpu_custom_call.1} parent=77 // pred_check
          %p701 = pneg %p195
        $region88: #{tpu_custom_call.1} parent=77 // pred_check_branch
          %703 = sbr.rel (%p701) target = $region90
        $region89: #{tpu_custom_call.1} parent=77 // pred_region
          %s705 = ssub.s32 512, 512
          %706 = vsyncadd %s697, %s705
          %s707 = smul.addr %s27, 8
          %s708 = sadd.s32 %s28, %s707
          %s709 = smul.addr %s708, 128
          %s710 = scalar_lea.hbm %s6, %s709
          %s711 = sshll.u32 %s700, 4
          %s712 = int_to_ptr.vmem [resolvable:$true] %s711
          %717 = dma.vmem_to_hbm [thread:$0]  %s712, 512, %s710, %s697, 128, 256, 8
        $region90: #{tpu_custom_call.1} parent=77 // pred_fallthru
          _
      $region78: #{tpu_custom_call.1} parent=5 // pred_fallthru
        _
      %p718 = scmp.le.s32.totalorder 2, %s18
      // Predicated region
      $region91: #{tpu_custom_call.1} parent=5 // pred_check
        %p719 = pneg %p718
      $region92: #{tpu_custom_call.1} parent=5 // pred_check_branch
        %721 = sbr.rel (%p719) target = $region94
      $region93: #{tpu_custom_call.1} parent=5 // pred_region
        %s722 = ssub.s32 %s18, 2
        // Predicated region
        $region95: #{tpu_custom_call.1} parent=93 // pred_check
          %p723 = pneg %p201
        $region96: #{tpu_custom_call.1} parent=93 // pred_check_branch
          %725 = sbr.rel (%p723) target = $region98
        $region97: #{tpu_custom_call.1} parent=93 // pred_region
          %s726 = sand.u32 %s186, 1
          %s727 = scalar_lea.sflag [#allocation5], %s726
          %s728 = sand.u32 %s186, 1
          %s729 = smul.addr %s728, 32
          %s730 = scalar_lea.vmem [#allocation6], %s729
          %731 = dma.done %s727, 512
        $region98: #{tpu_custom_call.1} parent=93 // pred_fallthru
          _
      $region94: #{tpu_custom_call.1} parent=5 // pred_fallthru
        _
    $region6: #{tpu_custom_call.1} parent=1 // loop_footer
      %s22 = sadd.s32 1, %s18
    $region7: #{tpu_custom_call.1} parent=1 // loop_footer_branch
      %17 = sbr.rel target = $region3
    $region8: #{tpu_custom_call.1} parent=1 // loop_exit
      _
    %732 = vsyncpa [#allocation4], 1
    %s733 = scalar_lea.sflag [#allocation4], 1
    %734 = vsyncpa %s733, 1
    %735 = vsyncpa [#allocation5], 1
    %s736 = scalar_lea.sflag [#allocation5], 1
    %737 = vsyncpa %s736, 1

</llo_original>
